<compile_context>
chip_gen: v7x
topology: tpu7x:2x2x1
jax: 0.10.0
libtpu: 0.0.40
codegen_flags: <defaults>
</compile_context>

<pallas_src>
import math
import functools

import jax
import jax.numpy as jnp
from jax import lax
from jax.experimental import pallas as pl
from jax.experimental.pallas import tpu as pltpu


def _round_up(x, m):
    return ((x + m - 1) // m) * m


def _vmem_capacity_bytes():
    try:
        return int(pltpu.get_tpu_info().vmem_capacity_bytes)
    except Exception:
        return 64 * 1024 * 1024  # conservative fallback (safe on every generation)


def _vmem_limit_bytes():
    # ~25% headroom for compiler-internal scratch (≈48 MiB on v7x, ≈96 MiB on v5e/v6e).
    return int(_vmem_capacity_bytes() * 3 // 4)


# ---------------------------------------------------------------------------
# Linear projection kernel: y = x @ wT + b   (wT pre-transposed to (in, out))
# ---------------------------------------------------------------------------
def _linear_kernel(x_ref, w_ref, b_ref, o_ref, *, compute_dtype):
    acc = jnp.dot(x_ref[...].astype(compute_dtype), w_ref[...],
                  preferred_element_type=jnp.float32)
    o_ref[...] = (acc + b_ref[...]).astype(o_ref.dtype)


def _linear(x2d, wT, b, *, compute_dtype, out_dtype, tr=512):
    """(R, In) @ (In, N) + (1, N) -> (R, N), row-tiled Pallas kernel."""
    R, In = x2d.shape
    N = wT.shape[1]
    tr = min(tr, _round_up(R, 8))
    Rp = _round_up(R, tr)
    if Rp != R:
        x2d = jnp.pad(x2d, ((0, Rp - R), (0, 0)))

    full = lambda i: (0, 0)
    cost = pl.CostEstimate(
        flops=int(2 * Rp * In * N), transcendentals=0,
        bytes_accessed=int(Rp * In * x2d.dtype.itemsize + In * N * wT.dtype.itemsize
                           + N * 4 + Rp * N * jnp.dtype(out_dtype).itemsize))
    out = pl.pallas_call(
        functools.partial(_linear_kernel, compute_dtype=compute_dtype),
        out_shape=jax.ShapeDtypeStruct((Rp, N), out_dtype),
        grid_spec=pltpu.PrefetchScalarGridSpec(
            num_scalar_prefetch=0,
            grid=(Rp // tr,),
            in_specs=[
                pl.BlockSpec((tr, In), lambda i: (i, 0)),
                # Constant-index weight/bias -> single buffer (no useless double buffering).
                pl.BlockSpec((In, N), full, pipeline_mode=pl.Buffered(1)),
                pl.BlockSpec((1, N), full, pipeline_mode=pl.Buffered(1)),
            ],
            out_specs=pl.BlockSpec((tr, N), lambda i: (i, 0)),
        ),
        compiler_params=pltpu.CompilerParams(
            dimension_semantics=("parallel",),
            vmem_limit_bytes=_vmem_limit_bytes()),
        cost_estimate=cost,
    )(x2d, wT, b)
    return out[:R] if Rp != R else out


# ---------------------------------------------------------------------------
# Attention kernel: per query tile, per-head softmax(Q K^T) V, then output projection.
# Q/K/V arrive already projected (and Q pre-scaled by 1/sqrt(head_dim) via the folded weights).
# ---------------------------------------------------------------------------
def _attention_kernel(q_ref, k_ref, v_ref, wo_ref, bo_ref, o_ref, attn_ref, *,
                      num_heads, head_dim, compute_dtype, approx_recip):
    f32 = jnp.float32
    cd = compute_dtype
    q = q_ref[...]   # (tq, E), compute dtype
    k = k_ref[...]   # (Sk, E), compute dtype
    v = v_ref[...]   # (Sk, E), compute dtype

    # Contract the last dims of q and k: qh @ kh.T without materializing a transpose of kh.
    dn = (((1,), (1,)), ((), ()))

    # TODO(synk): for head_dim < 128, process ceil(128/head_dim) heads per iteration with a batched
    # dot_general so the attn_ref stores stay lane-dense (sub-128-lane masked stores otherwise).
    for h in range(num_heads):
        lo = h * head_dim
        hi = lo + head_dim
        qh = q[:, lo:hi]                                   # (tq, D)
        kh = k[:, lo:hi]                                   # (Sk, D)
        vh = v[:, lo:hi]                                   # (Sk, D)

        s = lax.dot_general(qh, kh, dn, preferred_element_type=f32)   # (tq, Sk) scores, f32
        s = s - jnp.max(s, axis=-1, keepdims=True)
        # exp in the compute dtype (bf16 EUP on v6e/v7x); stays f32 on the f32 path for accuracy.
        p = jnp.exp(s if cd == f32 else s.astype(cd))
        l = jnp.sum(p.astype(f32), axis=-1, keepdims=True)            # (tq, 1) row sums
        # TODO(synk): attn_dropout is identity in eval mode; training-mode dropout not implemented.
        oh = jnp.dot(p.astype(cd), vh, preferred_element_type=f32)    # (tq, D)
        # Deferred softmax normalization on the small (tq, D) output instead of the (tq, Sk) probs.
        attn_ref[:, lo:hi] = (oh * pl.reciprocal(l, approx=approx_recip)).astype(cd)

    out = jnp.dot(attn_ref[...], wo_ref[...], preferred_element_type=f32) + bo_ref[...]
    o_ref[...] = out.astype(o_ref.dtype)


def multi_head_attention(query, key, value, params, *, num_heads, tq=None, compute_dtype=None):
    """query/key/value: (B, S, E). params: dict of wq,bq,wk,bk,wv,bv,wo,bo in PyTorch (out,in) layout.

    Returns (B, Sq, E); matches the PyTorch module's eval-mode forward (no masks, dropout off).
    """
    B, Sq, E = query.shape
    Sk = key.shape[1]
    assert E % num_heads == 0
    head_dim = E // num_heads
    scale = 1.0 / math.sqrt(head_dim)
    f32 = jnp.float32
    cd = jnp.dtype(compute_dtype) if compute_dtype is not None else jnp.dtype(query.dtype)
    # Approx (EUP vrcp) reciprocal for low-precision paths; exact on the f32 path for tight numerics.
    approx_recip = cd != jnp.dtype(jnp.float32)
    vmem_limit = _vmem_limit_bytes()

    # Per-generation default query tile: bigger on the 128 MiB-VMEM chips (v5e/v6e), 256 on v7x.
    if tq is None:
        tq = 512 if _vmem_capacity_bytes() > 96 * 1024 * 1024 else 256

    # Pre-transpose weights once in HBM to (in, out), fold the attention scale into Wq/bq, and store
    # weights in the MXU compute dtype.  Biases stay f32 (added to the f32 accumulator).
    wqT = (params["wq"].astype(f32).T * scale).astype(cd)
    bq = (params["bq"].astype(f32) * scale).reshape(1, E)
    wkT = params["wk"].astype(f32).T.astype(cd)
    bk = params["bk"].astype(f32).reshape(1, E)
    wvT = params["wv"].astype(f32).T.astype(cd)
    bv = params["bv"].astype(f32).reshape(1, E)
    woT = params["wo"].astype(f32).T.astype(cd)
    bo = params["bo"].astype(f32).reshape(1, E)

    # --- Projections (hoisted out of the attention kernel: computed once, not per query tile) ---
    if query is key and key is value:
        # Self-attention fast path: one fused (E, 3E) projection matmul.
        wqkvT = jnp.concatenate([wqT, wkT, wvT], axis=1)           # (E, 3E)
        bqkv = jnp.concatenate([bq, bk, bv], axis=1)               # (1, 3E)
        qkv = _linear(query.reshape(B * Sq, E), wqkvT, bqkv, compute_dtype=cd, out_dtype=cd)
        Qp = qkv[:, :E].reshape(B, Sq, E)
        Kp = qkv[:, E:2 * E].reshape(B, Sq, E)
        Vp = qkv[:, 2 * E:].reshape(B, Sq, E)
    else:
        # TODO(synk): fuse Wk|Wv into one (E, 2E) projection when key is value (cross-attention).
        Qp = _linear(query.reshape(B * Sq, E), wqT, bq, compute_dtype=cd, out_dtype=cd).reshape(B, Sq, E)
        Kp = _linear(key.reshape(B * Sk, E), wkT, bk, compute_dtype=cd, out_dtype=cd).reshape(B, Sk, E)
        Vp = _linear(value.reshape(B * Sk, E), wvT, bv, compute_dtype=cd, out_dtype=cd).reshape(B, Sk, E)

    # --- Attention + output projection ---
    tq = min(tq, _round_up(Sq, 8))
    Sqp = _round_up(Sq, tq)
    if Sqp != Sq:
        Qp = jnp.pad(Qp, ((0, 0), (0, Sqp - Sq), (0, 0)))   # padded query rows are sliced off below

    kernel = functools.partial(_attention_kernel, num_heads=num_heads, head_dim=head_dim,
                               compute_dtype=cd, approx_recip=approx_recip)
    full = lambda b, qi: (0, 0)
    flops = int(4 * B * Sqp * Sk * E + 2 * B * Sqp * E * E)
    transcendentals = int(B * num_heads * Sqp * Sk)
    bytes_accessed = int((B * Sqp * E + 2 * B * Sk * E + E * E) * cd.itemsize
                         + E * 4 + B * Sqp * E * query.dtype.itemsize)

    out = pl.pallas_call(
        kernel,
        out_shape=jax.ShapeDtypeStruct((B, Sqp, E), query.dtype),
        grid_spec=pltpu.PrefetchScalarGridSpec(
            num_scalar_prefetch=0,
            grid=(B, Sqp // tq),
            in_specs=[
                pl.BlockSpec((None, tq, E), lambda b, qi: (b, qi, 0)),   # projected query tile
                # Full-Sk K/V blocks (block index changes only when the batch index changes).
                # TODO(synk): flash-style KV tiling (online softmax) for very long Sk on v7x.
                pl.BlockSpec((None, Sk, E), lambda b, qi: (b, 0, 0)),
                pl.BlockSpec((None, Sk, E), lambda b, qi: (b, 0, 0)),
                pl.BlockSpec((E, E), full, pipeline_mode=pl.Buffered(1)),  # woT (constant index)
                pl.BlockSpec((1, E), full, pipeline_mode=pl.Buffered(1)),  # bo
            ],
            out_specs=pl.BlockSpec((None, tq, E), lambda b, qi: (b, qi, 0)),
            scratch_shapes=[pltpu.VMEM((tq, E), cd)],   # head-output slab in compute dtype
        ),
        compiler_params=pltpu.CompilerParams(
            dimension_semantics=("parallel", "parallel"),
            vmem_limit_bytes=vmem_limit),
        cost_estimate=pl.CostEstimate(flops=flops, transcendentals=transcendentals,
                                      bytes_accessed=bytes_accessed),
    )(Qp, Kp, Vp, woT, bo)
    return out[:, :Sq, :] if Sqp != Sq else out
    # TODO(synk): attn_mask / key_padding_mask and return_attention=True are not implemented
    # (the PyTorch forward defaults them to None/False).


# ---------------------------------------------------------------------------
# Parameter init + pure-JAX reference (mirrors the PyTorch module, eval mode, no masks)
# ---------------------------------------------------------------------------
def xavier_uniform(key, out_features, in_features, dtype=jnp.float32):
    bound = math.sqrt(6.0 / (in_features + out_features))
    return jax.random.uniform(key, (out_features, in_features), dtype,
                              minval=-bound, maxval=bound)


def make_params(key, embed_dim, dtype=jnp.float32):
    k1, k2, k3, k4 = jax.random.split(key, 4)
    zeros = jnp.zeros((embed_dim,), dtype)
    return dict(
        wq=xavier_uniform(k1, embed_dim, embed_dim, dtype), bq=zeros,
        wk=xavier_uniform(k2, embed_dim, embed_dim, dtype), bk=zeros,
        wv=xavier_uniform(k3, embed_dim, embed_dim, dtype), bv=zeros,
        wo=xavier_uniform(k4, embed_dim, embed_dim, dtype), bo=zeros,
    )


def reference_mha(query, key, value, params, *, num_heads):
    B, Sq, E = query.shape
    Sk = key.shape[1]
    D = E // num_heads
    scale = 1.0 / math.sqrt(D)
    lin = lambda x, w, b: x @ w.T + b
    Q = lin(query, params["wq"], params["bq"]).reshape(B, Sq, num_heads, D).transpose(0, 2, 1, 3)
    K = lin(key, params["wk"], params["bk"]).reshape(B, Sk, num_heads, D).transpose(0, 2, 1, 3)
    V = lin(value, params["wv"], params["bv"]).reshape(B, Sk, num_heads, D).transpose(0, 2, 1, 3)
    s = jnp.einsum("bhqd,bhkd->bhqk", Q, K) * scale
    p = jax.nn.softmax(s, axis=-1)
    o = jnp.einsum("bhqk,bhkd->bhqd", p, V).transpose(0, 2, 1, 3).reshape(B, Sq, E)
    return lin(o, params["wo"], params["bo"])


if __name__ == "__main__":
    B, S, E, H = 2, 8, 32, 4
    key = jax.random.PRNGKey(0)
    kq, kk, kv, kp = jax.random.split(key, 4)
    query = jax.random.normal(kq, (B, S, E), jnp.float32)
    keyx = jax.random.normal(kk, (B, S, E), jnp.float32)
    value = jax.random.normal(kv, (B, S, E), jnp.float32)
    params = make_params(kp, E)

    # f32 cross-attention path (matches the PyTorch module numerically).
    out = jax.block_until_ready(multi_head_attention(query, keyx, value, params, num_heads=H))
    ref = reference_mha(query, keyx, value, params, num_heads=H)
    assert out.shape == (B, S, E)
    assert jnp.allclose(out, ref, atol=1e-4, rtol=1e-4), "mismatch vs reference (f32, cross)"

    # f32 self-attention path (exercises the fused Wq|Wk|Wv projection fast path).
    out_self = jax.block_until_ready(multi_head_attention(query, query, query, params, num_heads=H))
    ref_self = reference_mha(query, query, query, params, num_heads=H)
    assert jnp.allclose(out_self, ref_self, atol=1e-4, rtol=1e-4), "mismatch vs reference (f32, self)"

    # Ragged query length (exercises the wrapper-side Sq padding path).
    q13 = jax.random.normal(jax.random.PRNGKey(1), (B, 13, E), jnp.float32)
    out13 = jax.block_until_ready(multi_head_attention(q13, keyx, value, params, num_heads=H))
    ref13 = reference_mha(q13, keyx, value, params, num_heads=H)
    assert out13.shape == (B, 13, E)
    assert jnp.allclose(out13, ref13, atol=1e-4, rtol=1e-4), "mismatch vs reference (ragged Sq)"

    # bf16-operand MXU path (bf16 inputs/weights, f32 accumulation, bf16 exp + approx reciprocal).
    out_bf16 = jax.block_until_ready(multi_head_attention(
        query.astype(jnp.bfloat16), keyx.astype(jnp.bfloat16), value.astype(jnp.bfloat16),
        params, num_heads=H))
    assert jnp.allclose(out_bf16.astype(jnp.float32), ref, atol=1e-1, rtol=1e-1), \
        "mismatch vs reference (bf16)"

    print("KERNEL_OK")
</pallas_src>

<mosaic_0001>
module attributes {stable_mosaic.version = 11 : i64} {
  func.func @_linear_kernel(%arg0: i32, %arg1: memref<16x32xf32, #tpu.memory_space<vmem>>, %arg2: memref<32x32xf32, #tpu.memory_space<vmem>>, %arg3: memref<1x32xf32, #tpu.memory_space<vmem>>, %arg4: memref<16x32xf32, #tpu.memory_space<vmem>>) attributes {dimension_semantics = [#tpu.dimension_semantics<parallel>], iteration_bounds = array<i64: 1>, scalar_prefetch = 0 : i64, scratch_operands = 0 : i64, tpu.core_type = #tpu.core_type<tc>, window_params = [{transform_indices = @transform_0, window_bounds = array<i64: 16, 32>}, {pipeline_mode = #tpu.pipeline_mode<synchronous>, transform_indices = @transform_1, window_bounds = array<i64: 32, 32>}, {pipeline_mode = #tpu.pipeline_mode<synchronous>, transform_indices = @transform_2, window_bounds = array<i64: 1, 32>}, {transform_indices = @transform_3, window_bounds = array<i64: 16, 32>}]} {
    %c0 = arith.constant 0 : index
    %c0_0 = arith.constant 0 : index
    %0 = vector.load %arg1[%c0, %c0_0] : memref<16x32xf32, #tpu.memory_space<vmem>>, vector<16x32xf32>
    %c0_1 = arith.constant 0 : index
    %c0_2 = arith.constant 0 : index
    %1 = vector.load %arg2[%c0_1, %c0_2] : memref<32x32xf32, #tpu.memory_space<vmem>>, vector<32x32xf32>
    %cst = arith.constant dense<0.000000e+00> : vector<16x32xf32>
    %2 = tpu.matmul %0, %1, %cst {dimension_numbers = #tpu.dot_dimension_numbers<[1], [0], [0], [1], [0, 0, 1, 1], [], []>} : vector<16x32xf32>, vector<32x32xf32>, vector<16x32xf32> -> vector<16x32xf32>
    %c0_3 = arith.constant 0 : index
    %c0_4 = arith.constant 0 : index
    %3 = vector.load %arg3[%c0_3, %c0_4] : memref<1x32xf32, #tpu.memory_space<vmem>>, vector<1x32xf32>
    %4 = vector.broadcast %3 : vector<1x32xf32> to vector<16x32xf32>
    %5 = arith.addf %2, %4 : vector<16x32xf32>
    %c0_5 = arith.constant 0 : index
    %c0_6 = arith.constant 0 : index
    %6 = vector.load %arg4[%c0_5, %c0_6] : memref<16x32xf32, #tpu.memory_space<vmem>>, vector<16x32xf32>
    tpu.vector_store %arg4[%c0_5, %c0_6], %5 {strides = array<i32>} : memref<16x32xf32, #tpu.memory_space<vmem>>, vector<16x32xf32>,
    return
  }
  func.func @transform_0(%arg0: i32) -> (i32, i32) {
    %c0_i32 = arith.constant 0 : i32
    %c0_i32_0 = arith.constant 0 : i32
    return %arg0, %c0_i32 : i32, i32
  }
  func.func @transform_1(%arg0: i32) -> (i32, i32) {
    %c0_i32 = arith.constant 0 : i32
    %c0_i32_0 = arith.constant 0 : i32
    %c0_i32_1 = arith.constant 0 : i32
    return %c0_i32, %c0_i32_0 : i32, i32
  }
  func.func @transform_2(%arg0: i32) -> (i32, i32) {
    %c0_i32 = arith.constant 0 : i32
    %c0_i32_0 = arith.constant 0 : i32
    %c0_i32_1 = arith.constant 0 : i32
    return %c0_i32, %c0_i32_0 : i32, i32
  }
  func.func @transform_3(%arg0: i32) -> (i32, i32) {
    %c0_i32 = arith.constant 0 : i32
    %c0_i32_0 = arith.constant 0 : i32
    return %arg0, %c0_i32 : i32, i32
  }
}

</mosaic_0001>

<llo_original>
// kernel: tpu_custom_call.1
$region0: #{tpu_custom_call.1}
  #allocation0 [shape = 'u32[]', space=smem, size = 0x4, offset = 0x4, fixed_abs, tag = 'smem constant byte address 0x4 - core index']
  #allocation1 [shape = 'u32[144,128]{1,0:T(1,128)}', space=vmem, size = 0x12000, scoped, tag = 'internal scratch']
  %s0 = inlined_call_operand.hbm [shape: f32[16,32], index: 0, kind: input, shape index: {}]
  %s1 = inlined_call_operand.hbm [shape: f32[32,32], index: 1, kind: input, shape index: {}]
  %s2 = inlined_call_operand.vmem [shape: f32[1,32], index: 2, kind: input, shape index: {}]
  %s3 = inlined_call_operand.hbm [shape: f32[16,32], index: 3, kind: output, shape index: {}]
  %s4 = sld [smem:[#allocation0]]
  $region30: #{tpu_custom_call.1} parent=0
    _
  %s6 = ssub.s32 1, %s4
  %s7 = scalar_select 0, %s6, %s4
  $region1: #{tpu_custom_call.1} parent=0
    #allocation2 [shape = 'u8[8192]{0}', space=vmem, size = 0x2000, scoped, tag = 'input window, operand 0, single buffered']
    #allocation3 [shape = 's32[1]{0}', space=sflag, size = 0x4, scoped, tag = 'scoped memory for tpu_custom_call.1']
    #allocation4 [shape = 's32[1]{0}', space=sflag, size = 0x4, scoped, tag = 'scoped memory for tpu_custom_call.1']
    #allocation5 [shape = 'u8[16384]{0}', space=vmem, size = 0x4000, scoped, tag = 'input window, operand 1, single buffered']
    #allocation6 [shape = 's32[1]{0}', space=sflag, size = 0x4, scoped, tag = 'scoped memory for tpu_custom_call.1']
    #allocation7 [shape = 'u8[8192]{0}', space=vmem, size = 0x2000, scoped, tag = 'output window, operand 0, single buffered']
    %8 = vsyncpa [#allocation3], 0
    %9 = vsyncpa [#allocation6], 0
    %10 = vsyncpa [#allocation4], 0
    // Predicated region
    $region2: #{tpu_custom_call.1} parent=1 // pred_check
      _
    $region3: #{tpu_custom_call.1} parent=1 // pred_check_branch
      %12 = sbr.rel (0) target = $region5
    $region4: #{tpu_custom_call.1} parent=1 // pred_region
      %s14 = ssub.s32 256, 256
      %15 = vsyncadd [#allocation3], %s14
      %s16 = sshll.u32 [#allocation2], 4
      %s17 = int_to_ptr.vmem [resolvable:$true] %s16
      %22 = dma.hbm_to_vmem [thread:$0]  %s0, 256, %s17, [#allocation3], 128, 128, 8
    $region5: #{tpu_custom_call.1} parent=1 // pred_fallthru
      _
    // Predicated region
    $region6: #{tpu_custom_call.1} parent=1 // pred_check
      _
    $region7: #{tpu_custom_call.1} parent=1 // pred_check_branch
      %24 = sbr.rel (0) target = $region9
    $region8: #{tpu_custom_call.1} parent=1 // pred_region
      %s26 = ssub.s32 512, 512
      %27 = vsyncadd [#allocation6], %s26
      %s28 = sshll.u32 [#allocation5], 4
      %s29 = int_to_ptr.vmem [resolvable:$true] %s28
      %34 = dma.hbm_to_vmem [thread:$0]  %s1, 512, %s29, [#allocation6], 128, 128, 8
    $region9: #{tpu_custom_call.1} parent=1 // pred_fallthru
      _
    // Predicated region
    $region10: #{tpu_custom_call.1} parent=1 // pred_check
      _
    $region11: #{tpu_custom_call.1} parent=1 // pred_check_branch
      %36 = sbr.rel (0) target = $region13
    $region12: #{tpu_custom_call.1} parent=1 // pred_region
      _
    $region13: #{tpu_custom_call.1} parent=1 // pred_fallthru
      _
    // Predicated region
    $region14: #{tpu_custom_call.1} parent=1 // pred_check
      _
    $region15: #{tpu_custom_call.1} parent=1 // pred_check_branch
      %38 = sbr.rel (0) target = $region17
    $region16: #{tpu_custom_call.1} parent=1 // pred_region
      %39 = dma.done [#allocation3], 256
    $region17: #{tpu_custom_call.1} parent=1 // pred_fallthru
      _
    // Predicated region
    $region18: #{tpu_custom_call.1} parent=1 // pred_check
      _
    $region19: #{tpu_custom_call.1} parent=1 // pred_check_branch
      %41 = sbr.rel (0) target = $region21
    $region20: #{tpu_custom_call.1} parent=1 // pred_region
      %42 = dma.done [#allocation6], 512
    $region21: #{tpu_custom_call.1} parent=1 // pred_fallthru
      _
    %v43 = vld [vmem:[#allocation2] sm:$0xff]
    %v44 = vld [vmem:[#allocation2 + $0x8] sm:$0xff]
    %v45 = vld [vmem:[#allocation5] sm:$0xff]
    %v46 = vld [vmem:[#allocation5 + $0x8] sm:$0xff]
    %v47 = vld [vmem:[#allocation5 + $0x10] sm:$0xff]
    %v48 = vld [vmem:[#allocation5 + $0x18] sm:$0xff]
    %v49 = vld [vmem:[%s2] sm:$0x1]
    %v51 = vlaneseq
    %v52 = vshrl.u32 %v51, 7
    %v53 = vsub.s32 0, %v52
    %v54 = vrot.slane %v49, %v53
    %vm56 = vcmask 261120
    %v58 = vsel %vm56, %v43, 0
    %v61 = vsel %vm56, %v44, 0
    %63 = vmatprep.subr.mxu0 0.0
    %64 = vmatpush1.msra.mxu0 %v45
    %65 = vmatprep.subr.mxu0 0.0
    %66 = vmatpush1.msra.mxu0 %v46
    %67 = vmatprep.subr.mxu0 0.0
    %68 = vmatpush1.msra.mxu0 %v47
    %69 = vmatprep.subr.mxu0 0.0
    %70 = vmatpush1.msra.mxu0 %v48
    %71 = vmatprep.subr.mxu0 0.0
    %72 = vmatpush1.msra.mxu0 0.0
    %73 = vmatprep.subr.mxu0 0.0
    %74 = vmatpush1.msra.mxu0 0.0
    %75 = vmatprep.subr.mxu0 0.0
    %76 = vmatpush1.msra.mxu0 0.0
    %77 = vmatprep.subr.mxu0 0.0
    %78 = vmatpush1.msra.mxu0 0.0
    %79 = vmatprep.subr.mxu0 0.0
    %80 = vmatpush1.msra.mxu0 0.0
    %81 = vmatprep.subr.mxu0 0.0
    %82 = vmatpush1.msra.mxu0 0.0
    %83 = vmatprep.subr.mxu0 0.0
    %84 = vmatpush1.msra.mxu0 0.0
    %85 = vmatprep.subr.mxu0 0.0
    %86 = vmatpush1.msra.mxu0 0.0
    %87 = vmatprep.subr.mxu0 0.0
    %88 = vmatpush1.msra.mxu0 0.0
    %89 = vmatprep.subr.mxu0 0.0
    %90 = vmatpush1.msra.mxu0 0.0
    %91 = vmatprep.subr.mxu0 0.0
    %92 = vmatpush1.msra.mxu0 0.0
    %93 = vmatprep.subr.mxu0 0.0
    %94 = vmatpush1.msra.mxu0 0.0
    %95 = vmatprep.subr.mxu0 0.0
    %96 = vmatpush1.msra.mxu0 0.0
    %97 = vmatprep.subr.mxu0 0.0
    %98 = vmatpush1.msra.mxu0 0.0
    %99 = vmatprep.subr.mxu0 0.0
    %100 = vmatpush1.msra.mxu0 0.0
    %101 = vmatprep.subr.mxu0 0.0
    %102 = vmatpush1.msra.mxu0 0.0
    %103 = vmatprep.subr.mxu0 0.0
    %104 = vmatpush1.msra.mxu0 0.0
    %105 = vmatprep.subr.mxu0 0.0
    %106 = vmatpush1.msra.mxu0 0.0
    %107 = vmatprep.subr.mxu0 0.0
    %108 = vmatpush1.msra.mxu0 0.0
    %109 = vmatprep.subr.mxu0 0.0
    %110 = vmatpush1.msra.mxu0 0.0
    %111 = vmatprep.subr.mxu0 0.0
    %112 = vmatpush1.msra.mxu0 0.0
    %113 = vmatprep.subr.mxu0 0.0
    %114 = vmatpush1.msra.mxu0 0.0
    %115 = vmatprep.subr.mxu0 0.0
    %116 = vmatpush1.msra.mxu0 0.0
    %117 = vmatprep.subr.mxu0 0.0
    %118 = vmatpush1.msra.mxu0 0.0
    %119 = vmatprep.subr.mxu0 0.0
    %120 = vmatpush1.msra.mxu0 0.0
    %121 = vmatprep.subr.mxu0 0.0
    %122 = vmatpush1.msra.mxu0 0.0
    %123 = vmatprep.subr.mxu0 0.0
    %124 = vmatpush1.msra.mxu0 0.0
    %125 = vmatprep.subr.mxu0 0.0
    %126 = vmatpush1.msra.mxu0 0.0
    %127 = vmatprep.mubr.f32.mxu0 0.0
    %128 = vmatmul.mubr.f32.gmra.mrb[0].mxu0 %v58
    %v129 = vpop.f32.mrb[0].mxu0
    %v130 = vadd.f32 %v54, %v129
    %v131 = vpop.f32.mrb[0].mxu0
    %132 = vmatprep.mubr.f32.mxu0 0.0
    %133 = vmatmul.mubr.f32.gmra.mrb[0].mxu0 %v61
    %v134 = vpop.f32.mrb[0].mxu0
    %v135 = vadd.f32 %v54, %v134
    %v136 = vpop.f32.mrb[0].mxu0
    %137 = vdwg.mxu0
    %138 = vst.msk [vmem:[#allocation7] sm:$0xff] %vm56, %v130
    %139 = vst.msk [vmem:[#allocation7 + $0x8] sm:$0xff] %vm56, %v135
    // Predicated region
    $region22: #{tpu_custom_call.1} parent=1 // pred_check
      _
    $region23: #{tpu_custom_call.1} parent=1 // pred_check_branch
      %141 = sbr.rel (0) target = $region25
    $region24: #{tpu_custom_call.1} parent=1 // pred_region
      %s143 = ssub.s32 256, 256
      %144 = vsyncadd [#allocation4], %s143
      %s145 = sshll.u32 [#allocation7], 4
      %s146 = int_to_ptr.vmem [resolvable:$true] %s145
      %151 = dma.vmem_to_hbm [thread:$0]  %s146, 256, %s3, [#allocation4], 128, 128, 8
    $region25: #{tpu_custom_call.1} parent=1 // pred_fallthru
      _
    // Predicated region
    $region26: #{tpu_custom_call.1} parent=1 // pred_check
      _
    $region27: #{tpu_custom_call.1} parent=1 // pred_check_branch
      %153 = sbr.rel (0) target = $region29
    $region28: #{tpu_custom_call.1} parent=1 // pred_region
      %154 = dma.done [#allocation4], 256
    $region29: #{tpu_custom_call.1} parent=1 // pred_fallthru
      _
    %155 = vsyncpa [#allocation3], 1
    %156 = vsyncpa [#allocation6], 1
    %157 = vsyncpa [#allocation4], 1

</llo_original>
